<compile_context>
chip_gen: v7x
topology: tpu7x:2x2x1
jax: 0.10.0
libtpu: 0.0.40
codegen_flags: <defaults>
</compile_context>

<pallas_src>
import jax
import jax.numpy as jnp
from jax import lax
from jax.experimental import pallas as pl
from jax.experimental.pallas import tpu as pltpu


def _round_up(x, m):
    return ((x + m - 1) // m) * m


def mlp_kernel(x_ref, w0_ref, b0_ref, w1_ref, b1_ref, w2_ref, b2_ref,
               w3t_ref, b3_ref, o_ref):
    # x_ref : [TB, 32] f32, batch-major, streamed straight from HBM.
    # w*    : PyTorch [out, in] layout, f32, VMEM-resident (constant index_maps).
    # o_ref : [1, TB] f32 -> lane-dense, unmasked vector stores.
    x = x_ref[...]                                            # [TB, 32]

    # Dense0: w0 @ x^T -> [10, TB]  (contract both operands' last dims).
    h = lax.dot_general(
        w0_ref[...], x,
        dimension_numbers=(((1,), (1,)), ((), ())),
        preferred_element_type=jnp.float32) + b0_ref[...]

    # Dense1 + ReLU
    h = jnp.dot(w1_ref[...], h, preferred_element_type=jnp.float32) + b1_ref[...]
    h = jnp.maximum(h, 0.0)

    # Dense2 + ReLU
    h = jnp.dot(w2_ref[...], h, preferred_element_type=jnp.float32) + b2_ref[...]
    h = jnp.maximum(h, 0.0)

    # Dense3 (10 -> 1) + ReLU on the VPU/XLU: broadcast-multiply + sublane
    # reduce; avoids an M=1 MXU round trip and keeps the store lane-dense.
    out = jnp.sum(w3t_ref[...] * h, axis=0, keepdims=True) + b3_ref[...]
    out = jnp.maximum(out, 0.0)

    o_ref[...] = out                                          # [1, TB]


def mlp_forward(x, params, *, tile_b=16384):
    """x: [B, 32] float32. params: PyTorch-layout weights [out,in], biases [out]."""
    B, F = x.shape
    assert F == 32, x.shape
    x = x.astype(jnp.float32)

    # Batch tile: multiple of 128 (lanes of the [1, TB] output block), capped at
    # tile_b (default 16384 — safe for v7x VMEM) and at ~B/4 so the pipeline
    # keeps several steps when the batch is large.
    TB = min(tile_b, _round_up(pl.cdiv(B, 4), 128))
    TB = max(128, _round_up(TB, 128))

    # Pad the batch only when the tile does not divide it (tiny / ragged
    # batches).  In the streaming case x is consumed with no wrapper-side copy.
    B_pad = _round_up(B, TB)
    if B_pad != B:
        x = jnp.pad(x, ((0, B_pad - B), (0, 0)))
    num_tiles = B_pad // TB

    w0 = params["w0"].astype(jnp.float32)                     # [10, 32]
    w1 = params["w1"].astype(jnp.float32)                     # [10, 10]
    w2 = params["w2"].astype(jnp.float32)                     # [10, 10]
    w3t = params["w3"].T.astype(jnp.float32)                  # [10, 1]
    b0 = params["b0"].reshape(-1, 1).astype(jnp.float32)      # [10, 1]
    b1 = params["b1"].reshape(-1, 1).astype(jnp.float32)      # [10, 1]
    b2 = params["b2"].reshape(-1, 1).astype(jnp.float32)      # [10, 1]
    b3 = params["b3"].reshape(1, 1).astype(jnp.float32)       # [1, 1]

    def const_spec(a):
        # Full block, constant index_map -> stays resident in VMEM.
        return pl.BlockSpec(a.shape, lambda i: (0, 0))

    flops = 2 * B_pad * (32 * 10 + 10 * 10 + 10 * 10 + 10 * 1)
    bytes_accessed = (B_pad * 32 * 4          # x read (f32)
                      + B_pad * 4             # output write
                      + 4 * (10 * 32 + 2 * 10 * 10 + 10 + 3 * 10 + 1))  # params

    out = pl.pallas_call(
        mlp_kernel,
        out_shape=jax.ShapeDtypeStruct((1, B_pad), jnp.float32),
        grid=(num_tiles,),
        in_specs=[
            pl.BlockSpec((TB, 32), lambda i: (i, 0)),         # x batch-major stream
            const_spec(w0), const_spec(b0),
            const_spec(w1), const_spec(b1),
            const_spec(w2), const_spec(b2),
            const_spec(w3t), const_spec(b3),
        ],
        out_specs=pl.BlockSpec((1, TB), lambda i: (0, i)),    # lane-dense output slab
        compiler_params=pltpu.CompilerParams(
            dimension_semantics=("parallel",),
            vmem_limit_bytes=48 * 1024 * 1024),
        cost_estimate=pl.CostEstimate(
            flops=flops, transcendentals=0, bytes_accessed=bytes_accessed),
    )(x, w0, b0, w1, b1, w2, b2, w3t, b3)

    # Back to PyTorch's [B, 1] layout, dropping any batch padding.
    return out[0, :B].reshape(B, 1)


def init_params(key):
    """PyTorch-style init: U(-1/sqrt(fan_in), 1/sqrt(fan_in)); [out,in] weights."""
    dims = [(32, 10), (10, 10), (10, 10), (10, 1)]
    params = {}
    for i, (fan_in, fan_out) in enumerate(dims):
        key, kw, kb = jax.random.split(key, 3)
        bound = 1.0 / jnp.sqrt(float(fan_in))
        params[f"w{i}"] = jax.random.uniform(
            kw, (fan_out, fan_in), jnp.float32, -bound, bound)
        params[f"b{i}"] = jax.random.uniform(
            kb, (fan_out,), jnp.float32, -bound, bound)
    return params


def reference_forward(x, p):
    h = x @ p["w0"].T + p["b0"]
    h = jnp.maximum(h @ p["w1"].T + p["b1"], 0.0)
    h = jnp.maximum(h @ p["w2"].T + p["b2"], 0.0)
    h = jnp.maximum(h @ p["w3"].T + p["b3"], 0.0)
    return h


if __name__ == "__main__":
    key = jax.random.PRNGKey(0)
    key, kx = jax.random.split(key)
    params = init_params(key)

    # Small shape consistent with the module: batch=8, in_features=32.
    B = 8
    x = jax.random.normal(kx, (B, 32), jnp.float32)
    out = jax.block_until_ready(mlp_forward(x, params))
    ref = reference_forward(x, params)
    assert out.shape == (B, 1), out.shape
    assert jnp.allclose(out, ref, atol=3e-2, rtol=3e-2), \
        f"max abs err {float(jnp.max(jnp.abs(out - ref)))}"

    # Multi-tile grid with batch padding (ragged tail path).
    B2 = 300
    x2 = jax.random.normal(jax.random.PRNGKey(1), (B2, 32), jnp.float32)
    out2 = jax.block_until_ready(mlp_forward(x2, params, tile_b=128))
    ref2 = reference_forward(x2, params)
    assert out2.shape == (B2, 1), out2.shape
    assert jnp.allclose(out2, ref2, atol=3e-2, rtol=3e-2), \
        f"max abs err {float(jnp.max(jnp.abs(out2 - ref2)))}"

    # No-pad streaming path: TB divides B exactly, multi-step pipeline.
    B3 = 1024
    x3 = jax.random.normal(jax.random.PRNGKey(2), (B3, 32), jnp.float32)
    out3 = jax.block_until_ready(mlp_forward(x3, params))
    ref3 = reference_forward(x3, params)
    assert out3.shape == (B3, 1), out3.shape
    assert jnp.allclose(out3, ref3, atol=3e-2, rtol=3e-2), \
        f"max abs err {float(jnp.max(jnp.abs(out3 - ref3)))}"

    print("KERNEL_OK")
</pallas_src>

<mosaic_0001>
module attributes {stable_mosaic.version = 11 : i64} {
  func.func @mlp_kernel(%arg0: i32, %arg1: memref<128x32xf32, #tpu.memory_space<vmem>>, %arg2: memref<10x32xf32, #tpu.memory_space<vmem>>, %arg3: memref<10x1xf32, #tpu.memory_space<vmem>>, %arg4: memref<10x10xf32, #tpu.memory_space<vmem>>, %arg5: memref<10x1xf32, #tpu.memory_space<vmem>>, %arg6: memref<10x10xf32, #tpu.memory_space<vmem>>, %arg7: memref<10x1xf32, #tpu.memory_space<vmem>>, %arg8: memref<10x1xf32, #tpu.memory_space<vmem>>, %arg9: memref<1x1xf32, #tpu.memory_space<vmem>>, %arg10: memref<1x128xf32, #tpu.memory_space<vmem>>) attributes {dimension_semantics = [#tpu.dimension_semantics<parallel>], iteration_bounds = array<i64: 1>, scalar_prefetch = 0 : i64, scratch_operands = 0 : i64, tpu.core_type = #tpu.core_type<tc>, window_params = [{transform_indices = @transform_0, window_bounds = array<i64: 128, 32>}, {pipeline_mode = #tpu.pipeline_mode<synchronous>, transform_indices = @transform_1, window_bounds = array<i64: 10, 32>}, {pipeline_mode = #tpu.pipeline_mode<synchronous>, transform_indices = @transform_2, window_bounds = array<i64: 10, 1>}, {pipeline_mode = #tpu.pipeline_mode<synchronous>, transform_indices = @transform_3, window_bounds = array<i64: 10, 10>}, {pipeline_mode = #tpu.pipeline_mode<synchronous>, transform_indices = @transform_4, window_bounds = array<i64: 10, 1>}, {pipeline_mode = #tpu.pipeline_mode<synchronous>, transform_indices = @transform_5, window_bounds = array<i64: 10, 10>}, {pipeline_mode = #tpu.pipeline_mode<synchronous>, transform_indices = @transform_6, window_bounds = array<i64: 10, 1>}, {pipeline_mode = #tpu.pipeline_mode<synchronous>, transform_indices = @transform_7, window_bounds = array<i64: 10, 1>}, {pipeline_mode = #tpu.pipeline_mode<synchronous>, transform_indices = @transform_8, window_bounds = array<i64: 1, 1>}, {transform_indices = @transform_9, window_bounds = array<i64: 1, 128>}]} {
    %c0 = arith.constant 0 : index
    %c0_0 = arith.constant 0 : index
    %0 = vector.load %arg1[%c0, %c0_0] : memref<128x32xf32, #tpu.memory_space<vmem>>, vector<128x32xf32>
    %c0_1 = arith.constant 0 : index
    %c0_2 = arith.constant 0 : index
    %1 = vector.load %arg2[%c0_1, %c0_2] : memref<10x32xf32, #tpu.memory_space<vmem>>, vector<10x32xf32>
    %cst = arith.constant dense<0.000000e+00> : vector<10x128xf32>
    %2 = tpu.matmul %1, %0, %cst {dimension_numbers = #tpu.dot_dimension_numbers<[1], [1], [0], [0], [0, 0, 1, 0], [], []>} : vector<10x32xf32>, vector<128x32xf32>, vector<10x128xf32> -> vector<10x128xf32>
    %c0_3 = arith.constant 0 : index
    %c0_4 = arith.constant 0 : index
    %3 = vector.load %arg3[%c0_3, %c0_4] : memref<10x1xf32, #tpu.memory_space<vmem>>, vector<10x1xf32>
    %4 = vector.broadcast %3 : vector<10x1xf32> to vector<10x128xf32>
    %5 = arith.addf %2, %4 : vector<10x128xf32>
    %c0_5 = arith.constant 0 : index
    %c0_6 = arith.constant 0 : index
    %6 = vector.load %arg4[%c0_5, %c0_6] : memref<10x10xf32, #tpu.memory_space<vmem>>, vector<10x10xf32>
    %cst_7 = arith.constant dense<0.000000e+00> : vector<10x128xf32>
    %7 = tpu.matmul %6, %5, %cst_7 {dimension_numbers = #tpu.dot_dimension_numbers<[1], [0], [0], [1], [0, 0, 1, 1], [], []>} : vector<10x10xf32>, vector<10x128xf32>, vector<10x128xf32> -> vector<10x128xf32>
    %c0_8 = arith.constant 0 : index
    %c0_9 = arith.constant 0 : index
    %8 = vector.load %arg5[%c0_8, %c0_9] : memref<10x1xf32, #tpu.memory_space<vmem>>, vector<10x1xf32>
    %9 = vector.broadcast %8 : vector<10x1xf32> to vector<10x128xf32>
    %10 = arith.addf %7, %9 : vector<10x128xf32>
    %cst_10 = arith.constant 0.000000e+00 : f32
    %11 = vector.broadcast %cst_10 : f32 to vector<10x128xf32>
    %12 = arith.maximumf %10, %11 : vector<10x128xf32>
    %c0_11 = arith.constant 0 : index
    %c0_12 = arith.constant 0 : index
    %13 = vector.load %arg6[%c0_11, %c0_12] : memref<10x10xf32, #tpu.memory_space<vmem>>, vector<10x10xf32>
    %cst_13 = arith.constant dense<0.000000e+00> : vector<10x128xf32>
    %14 = tpu.matmul %13, %12, %cst_13 {dimension_numbers = #tpu.dot_dimension_numbers<[1], [0], [0], [1], [0, 0, 1, 1], [], []>} : vector<10x10xf32>, vector<10x128xf32>, vector<10x128xf32> -> vector<10x128xf32>
    %c0_14 = arith.constant 0 : index
    %c0_15 = arith.constant 0 : index
    %15 = vector.load %arg7[%c0_14, %c0_15] : memref<10x1xf32, #tpu.memory_space<vmem>>, vector<10x1xf32>
    %16 = vector.broadcast %15 : vector<10x1xf32> to vector<10x128xf32>
    %17 = arith.addf %14, %16 : vector<10x128xf32>
    %cst_16 = arith.constant 0.000000e+00 : f32
    %18 = vector.broadcast %cst_16 : f32 to vector<10x128xf32>
    %19 = arith.maximumf %17, %18 : vector<10x128xf32>
    %c0_17 = arith.constant 0 : index
    %c0_18 = arith.constant 0 : index
    %20 = vector.load %arg8[%c0_17, %c0_18] : memref<10x1xf32, #tpu.memory_space<vmem>>, vector<10x1xf32>
    %21 = vector.broadcast %20 : vector<10x1xf32> to vector<10x128xf32>
    %22 = arith.mulf %21, %19 : vector<10x128xf32>
    %cst_19 = arith.constant dense<0.000000e+00> : vector<128xf32>
    %23 = vector.multi_reduction <add>, %22, %cst_19 [0] : vector<10x128xf32> to vector<128xf32>
    %24 = vector.shape_cast %23 : vector<128xf32> to vector<1x128xf32>
    %c0_20 = arith.constant 0 : index
    %c0_21 = arith.constant 0 : index
    %25 = vector.load %arg9[%c0_20, %c0_21] : memref<1x1xf32, #tpu.memory_space<vmem>>, vector<1x1xf32>
    %26 = vector.broadcast %25 : vector<1x1xf32> to vector<1x128xf32>
    %27 = arith.addf %24, %26 : vector<1x128xf32>
    %cst_22 = arith.constant 0.000000e+00 : f32
    %28 = vector.broadcast %cst_22 : f32 to vector<1x128xf32>
    %29 = arith.maximumf %27, %28 : vector<1x128xf32>
    %c0_23 = arith.constant 0 : index
    %c0_24 = arith.constant 0 : index
    %30 = vector.load %arg10[%c0_23, %c0_24] : memref<1x128xf32, #tpu.memory_space<vmem>>, vector<1x128xf32>
    tpu.vector_store %arg10[%c0_23, %c0_24], %29 {strides = array<i32>} : memref<1x128xf32, #tpu.memory_space<vmem>>, vector<1x128xf32>,
    return
  }
  func.func @transform_0(%arg0: i32) -> (i32, i32) {
    %c0_i32 = arith.constant 0 : i32
    %c0_i32_0 = arith.constant 0 : i32
    return %arg0, %c0_i32 : i32, i32
  }
  func.func @transform_1(%arg0: i32) -> (i32, i32) {
    %c0_i32 = arith.constant 0 : i32
    %c0_i32_0 = arith.constant 0 : i32
    %c0_i32_1 = arith.constant 0 : i32
    return %c0_i32, %c0_i32_0 : i32, i32
  }
  func.func @transform_2(%arg0: i32) -> (i32, i32) {
    %c0_i32 = arith.constant 0 : i32
    %c0_i32_0 = arith.constant 0 : i32
    %c0_i32_1 = arith.constant 0 : i32
    return %c0_i32, %c0_i32_0 : i32, i32
  }
  func.func @transform_3(%arg0: i32) -> (i32, i32) {
    %c0_i32 = arith.constant 0 : i32
    %c0_i32_0 = arith.constant 0 : i32
    %c0_i32_1 = arith.constant 0 : i32
    return %c0_i32, %c0_i32_0 : i32, i32
  }
  func.func @transform_4(%arg0: i32) -> (i32, i32) {
    %c0_i32 = arith.constant 0 : i32
    %c0_i32_0 = arith.constant 0 : i32
    %c0_i32_1 = arith.constant 0 : i32
    return %c0_i32, %c0_i32_0 : i32, i32
  }
  func.func @transform_5(%arg0: i32) -> (i32, i32) {
    %c0_i32 = arith.constant 0 : i32
    %c0_i32_0 = arith.constant 0 : i32
    %c0_i32_1 = arith.constant 0 : i32
    return %c0_i32, %c0_i32_0 : i32, i32
  }
  func.func @transform_6(%arg0: i32) -> (i32, i32) {
    %c0_i32 = arith.constant 0 : i32
    %c0_i32_0 = arith.constant 0 : i32
    %c0_i32_1 = arith.constant 0 : i32
    return %c0_i32, %c0_i32_0 : i32, i32
  }
  func.func @transform_7(%arg0: i32) -> (i32, i32) {
    %c0_i32 = arith.constant 0 : i32
    %c0_i32_0 = arith.constant 0 : i32
    %c0_i32_1 = arith.constant 0 : i32
    return %c0_i32, %c0_i32_0 : i32, i32
  }
  func.func @transform_8(%arg0: i32) -> (i32, i32) {
    %c0_i32 = arith.constant 0 : i32
    %c0_i32_0 = arith.constant 0 : i32
    %c0_i32_1 = arith.constant 0 : i32
    return %c0_i32, %c0_i32_0 : i32, i32
  }
  func.func @transform_9(%arg0: i32) -> (i32, i32) {
    %c0_i32 = arith.constant 0 : i32
    %c0_i32_0 = arith.constant 0 : i32
    return %c0_i32, %arg0 : i32, i32
  }
}

</mosaic_0001>

<llo_original>
// kernel: tpu_custom_call.1
$region0: #{tpu_custom_call.1}
  #allocation0 [shape = 'u32[]', space=smem, size = 0x4, offset = 0x4, fixed_abs, tag = 'smem constant byte address 0x4 - core index']
  #allocation1 [shape = 'u32[144,128]{1,0:T(1,128)}', space=vmem, size = 0x12000, scoped, tag = 'internal scratch']
  #allocation2 [shape = 'f32[1,1]{1,0:T(1,128)S(1)}', space=vmem, size = 0x200, scoped, tag = 'scoped memory for tpu_custom_call.1']
  %s0 = inlined_call_operand.vmem [shape: f32[128,32], index: 0, kind: input, shape index: {}]
  %s1 = inlined_call_operand.vmem [shape: f32[10,32], index: 1, kind: input, shape index: {}]
  %s2 = inlined_call_operand.vmem [shape: f32[10,1], index: 2, kind: input, shape index: {}]
  %s3 = inlined_call_operand.vmem [shape: f32[10,10], index: 3, kind: input, shape index: {}]
  %s4 = inlined_call_operand.vmem [shape: f32[10,1], index: 4, kind: input, shape index: {}]
  %s5 = inlined_call_operand.vmem [shape: f32[10,10], index: 5, kind: input, shape index: {}]
  %s6 = inlined_call_operand.vmem [shape: f32[10,1], index: 6, kind: input, shape index: {}]
  %s7 = inlined_call_operand.vmem [shape: f32[10,1], index: 7, kind: input, shape index: {}]
  %s8 = inlined_call_operand.<no memory space> [shape: f32[1,1], index: 8, kind: input, shape index: {}]
  %s9 = inlined_call_operand.hbm [shape: f32[1,128], index: 9, kind: output, shape index: {}]
  %s10 = sld [smem:[#allocation0]]
  $region46: #{tpu_custom_call.1} parent=0
    _
  %s12 = ssub.s32 1, %s10
  %s13 = scalar_select 0, %s12, %s10
  %v14 = vstv %s8
  %15 = vst [vmem:[#allocation2] sm:$0x1] %v14
  $region1: #{tpu_custom_call.1} parent=0
    #allocation3 [shape = 'u8[512]{0}', space=vmem, size = 0x400, scoped, tag = 'output window, operand 0, single buffered']
    #allocation4 [shape = 's32[1]{0}', space=sflag, size = 0x4, scoped, tag = 'scoped memory for tpu_custom_call.1']
    %16 = vsyncpa [#allocation4], 0
    // Predicated region
    $region2: #{tpu_custom_call.1} parent=1 // pred_check
      _
    $region3: #{tpu_custom_call.1} parent=1 // pred_check_branch
      %18 = sbr.rel (0) target = $region5
    $region4: #{tpu_custom_call.1} parent=1 // pred_region
      _
    $region5: #{tpu_custom_call.1} parent=1 // pred_fallthru
      _
    // Predicated region
    $region6: #{tpu_custom_call.1} parent=1 // pred_check
      _
    $region7: #{tpu_custom_call.1} parent=1 // pred_check_branch
      %20 = sbr.rel (0) target = $region9
    $region8: #{tpu_custom_call.1} parent=1 // pred_region
      _
    $region9: #{tpu_custom_call.1} parent=1 // pred_fallthru
      _
    // Predicated region
    $region10: #{tpu_custom_call.1} parent=1 // pred_check
      _
    $region11: #{tpu_custom_call.1} parent=1 // pred_check_branch
      %22 = sbr.rel (0) target = $region13
    $region12: #{tpu_custom_call.1} parent=1 // pred_region
      _
    $region13: #{tpu_custom_call.1} parent=1 // pred_fallthru
      _
    // Predicated region
    $region14: #{tpu_custom_call.1} parent=1 // pred_check
      _
    $region15: #{tpu_custom_call.1} parent=1 // pred_check_branch
      %24 = sbr.rel (0) target = $region17
    $region16: #{tpu_custom_call.1} parent=1 // pred_region
      _
    $region17: #{tpu_custom_call.1} parent=1 // pred_fallthru
      _
    // Predicated region
    $region18: #{tpu_custom_call.1} parent=1 // pred_check
      _
    $region19: #{tpu_custom_call.1} parent=1 // pred_check_branch
      %26 = sbr.rel (0) target = $region21
    $region20: #{tpu_custom_call.1} parent=1 // pred_region
      _
    $region21: #{tpu_custom_call.1} parent=1 // pred_fallthru
      _
    // Predicated region
    $region22: #{tpu_custom_call.1} parent=1 // pred_check
      _
    $region23: #{tpu_custom_call.1} parent=1 // pred_check_branch
      %28 = sbr.rel (0) target = $region25
    $region24: #{tpu_custom_call.1} parent=1 // pred_region
      _
    $region25: #{tpu_custom_call.1} parent=1 // pred_fallthru
      _
    // Predicated region
    $region26: #{tpu_custom_call.1} parent=1 // pred_check
      _
    $region27: #{tpu_custom_call.1} parent=1 // pred_check_branch
      %30 = sbr.rel (0) target = $region29
    $region28: #{tpu_custom_call.1} parent=1 // pred_region
      _
    $region29: #{tpu_custom_call.1} parent=1 // pred_fallthru
      _
    // Predicated region
    $region30: #{tpu_custom_call.1} parent=1 // pred_check
      _
    $region31: #{tpu_custom_call.1} parent=1 // pred_check_branch
      %32 = sbr.rel (0) target = $region33
    $region32: #{tpu_custom_call.1} parent=1 // pred_region
      _
    $region33: #{tpu_custom_call.1} parent=1 // pred_fallthru
      _
    // Predicated region
    $region34: #{tpu_custom_call.1} parent=1 // pred_check
      _
    $region35: #{tpu_custom_call.1} parent=1 // pred_check_branch
      %34 = sbr.rel (0) target = $region37
    $region36: #{tpu_custom_call.1} parent=1 // pred_region
      _
    $region37: #{tpu_custom_call.1} parent=1 // pred_fallthru
      _
    %v35 = vld [vmem:[%s0] sm:$0xff]
    %v36 = vld [vmem:[%s0 + $0x8] sm:$0xff]
    %v37 = vld [vmem:[%s0 + $0x10] sm:$0xff]
    %v38 = vld [vmem:[%s0 + $0x18] sm:$0xff]
    %v39 = vld [vmem:[%s0 + $0x20] sm:$0xff]
    %v40 = vld [vmem:[%s0 + $0x28] sm:$0xff]
    %v41 = vld [vmem:[%s0 + $0x30] sm:$0xff]
    %v42 = vld [vmem:[%s0 + $0x38] sm:$0xff]
    %v43 = vld [vmem:[%s0 + $0x40] sm:$0xff]
    %v44 = vld [vmem:[%s0 + $0x48] sm:$0xff]
    %v45 = vld [vmem:[%s0 + $0x50] sm:$0xff]
    %v46 = vld [vmem:[%s0 + $0x58] sm:$0xff]
    %v47 = vld [vmem:[%s0 + $0x60] sm:$0xff]
    %v48 = vld [vmem:[%s0 + $0x68] sm:$0xff]
    %v49 = vld [vmem:[%s0 + $0x70] sm:$0xff]
    %v50 = vld [vmem:[%s0 + $0x78] sm:$0xff]
    %v51 = vld [vmem:[%s1] sm:$0xff]
    %v52 = vld [vmem:[%s1 + $0x8] sm:$0x3]
    %v53 = vld [vmem:[%s2] sm:$0xff]
    %v54 = vld [vmem:[%s2 + $0x8] sm:$0x3]
    %56 = vset.pattern.permute.xlu0 0
    %57 = vperm.xlu0 %56, %v53
    %v58 = vpop.permute.xlu0 %57
    %61 = vset.pattern.permute.xlu0 0
    %62 = vperm.xlu0 %61, %v54
    %v63 = vpop.permute.xlu0 %62
    %vm65 = vcmask 261120
    %v67 = vsel %vm65, %v51, 0
    %v70 = vsel %vm65, %v52, 0
    %v73 = vsel %vm65, %v35, 0
    %v76 = vsel %vm65, %v36, 0
    %v79 = vsel %vm65, %v37, 0
    %v82 = vsel %vm65, %v38, 0
    %v85 = vsel %vm65, %v39, 0
    %v88 = vsel %vm65, %v40, 0
    %v91 = vsel %vm65, %v41, 0
    %v94 = vsel %vm65, %v42, 0
    %v97 = vsel %vm65, %v43, 0
    %v100 = vsel %vm65, %v44, 0
    %v103 = vsel %vm65, %v45, 0
    %v106 = vsel %vm65, %v46, 0
    %v109 = vsel %vm65, %v47, 0
    %v112 = vsel %vm65, %v48, 0
    %v115 = vsel %vm65, %v49, 0
    %v118 = vsel %vm65, %v50, 0
    %120 = vmatprep.subr.mxu0 0.0
    %121 = vmatpush1.xpose.msra.mxu0 %v73
    %122 = vmatprep.subr.mxu0 0.0
    %123 = vmatpush1.xpose.msra.mxu0 %v76
    %124 = vmatprep.subr.mxu0 0.0
    %125 = vmatpush1.xpose.msra.mxu0 %v79
    %126 = vmatprep.subr.mxu0 0.0
    %127 = vmatpush1.xpose.msra.mxu0 %v82
    %128 = vmatprep.subr.mxu0 0.0
    %129 = vmatpush1.xpose.msra.mxu0 %v85
    %130 = vmatprep.subr.mxu0 0.0
    %131 = vmatpush1.xpose.msra.mxu0 %v88
    %132 = vmatprep.subr.mxu0 0.0
    %133 = vmatpush1.xpose.msra.mxu0 %v91
    %134 = vmatprep.subr.mxu0 0.0
    %135 = vmatpush1.xpose.msra.mxu0 %v94
    %136 = vmatprep.subr.mxu0 0.0
    %137 = vmatpush1.xpose.msra.mxu0 %v97
    %138 = vmatprep.subr.mxu0 0.0
    %139 = vmatpush1.xpose.msra.mxu0 %v100
    %140 = vmatprep.subr.mxu0 0.0
    %141 = vmatpush1.xpose.msra.mxu0 %v103
    %142 = vmatprep.subr.mxu0 0.0
    %143 = vmatpush1.xpose.msra.mxu0 %v106
    %144 = vmatprep.subr.mxu0 0.0
    %145 = vmatpush1.xpose.msra.mxu0 %v109
    %146 = vmatprep.subr.mxu0 0.0
    %147 = vmatpush1.xpose.msra.mxu0 %v112
    %148 = vmatprep.subr.mxu0 0.0
    %149 = vmatpush1.xpose.msra.mxu0 %v115
    %150 = vmatprep.subr.mxu0 0.0
    %151 = vmatpush1.xpose.msra.mxu0 %v118
    %152 = vmatprep.subr.mxu0 0.0
    %153 = vmatpush1.xpose.msra.mxu0 0.0
    %154 = vmatprep.subr.mxu0 0.0
    %155 = vmatpush1.xpose.msra.mxu0 0.0
    %156 = vmatprep.subr.mxu0 0.0
    %157 = vmatpush1.xpose.msra.mxu0 0.0
    %158 = vmatprep.subr.mxu0 0.0
    %159 = vmatpush1.xpose.msra.mxu0 0.0
    %160 = vmatprep.subr.mxu0 0.0
    %161 = vmatpush1.xpose.msra.mxu0 0.0
    %162 = vmatprep.subr.mxu0 0.0
    %163 = vmatpush1.xpose.msra.mxu0 0.0
    %164 = vmatprep.subr.mxu0 0.0
    %165 = vmatpush1.xpose.msra.mxu0 0.0
    %166 = vmatprep.subr.mxu0 0.0
    %167 = vmatpush1.xpose.msra.mxu0 0.0
    %168 = vmatprep.subr.mxu0 0.0
    %169 = vmatpush1.xpose.msra.mxu0 0.0
    %170 = vmatprep.subr.mxu0 0.0
    %171 = vmatpush1.xpose.msra.mxu0 0.0
    %172 = vmatprep.subr.mxu0 0.0
    %173 = vmatpush1.xpose.msra.mxu0 0.0
    %174 = vmatprep.subr.mxu0 0.0
    %175 = vmatpush1.xpose.msra.mxu0 0.0
    %176 = vmatprep.subr.mxu0 0.0
    %177 = vmatpush1.xpose.msra.mxu0 0.0
    %178 = vmatprep.subr.mxu0 0.0
    %179 = vmatpush1.xpose.msra.mxu0 0.0
    %180 = vmatprep.subr.mxu0 0.0
    %181 = vmatpush1.xpose.msra.mxu0 0.0
    %182 = vmatprep.subr.mxu0 0.0
    %183 = vmatpush1.xpose.msra.mxu0 0.0
    %184 = vmatprep.mubr.f32.mxu0 0.0
    %185 = vmatmul.mubr.f32.gmra.mrb[0].mxu0 %v67
    %v186 = vpop.f32.mrb[0].mxu0
    %v187 = vadd.f32 %v58, %v186
    %v188 = vpop.f32.mrb[0].mxu0
    %189 = vmatprep.mubr.f32.mxu0 0.0
    %190 = vmatmul.mubr.f32.gmra.mrb[0].mxu0 %v70
    %v191 = vpop.f32.mrb[0].mxu0
    %v192 = vadd.f32 %v63, %v191
    %v193 = vpop.f32.mrb[0].mxu0
    %194 = vdwg.mxu0
    %v195 = vld [vmem:[%s3] sm:$0xff]
    %v196 = vld [vmem:[%s3 + $0x8] sm:$0x3]
    %v197 = vld [vmem:[%s4] sm:$0xff]
    %v198 = vld [vmem:[%s4 + $0x8] sm:$0x3]
    %200 = vset.pattern.permute.xlu0 0
    %201 = vperm.xlu0 %200, %v197
    %v202 = vpop.permute.xlu0 %201
    %205 = vset.pattern.permute.xlu0 0
    %206 = vperm.xlu0 %205, %v198
    %v207 = vpop.permute.xlu0 %206
    %vm209 = vcmask 80896
    %v211 = vsel %vm209, %v195, 0
    %v214 = vsel %vm209, %v196, 0
    %vm216 = vcmask 1041408
    %v218 = vsel %vm216, %v192, 0
    %220 = vmatprep.subr.mxu0 0.0
    %221 = vmatpush1.msra.mxu0 %v187
    %222 = vmatprep.subr.mxu0 0.0
    %223 = vmatpush1.msra.mxu0 %v218
    %224 = vmatprep.subr.mxu0 0.0
    %225 = vmatpush1.msra.mxu0 0.0
    %226 = vmatprep.subr.mxu0 0.0
    %227 = vmatpush1.msra.mxu0 0.0
    %228 = vmatprep.subr.mxu0 0.0
    %229 = vmatpush1.msra.mxu0 0.0
    %230 = vmatprep.subr.mxu0 0.0
    %231 = vmatpush1.msra.mxu0 0.0
    %232 = vmatprep.subr.mxu0 0.0
    %233 = vmatpush1.msra.mxu0 0.0
    %234 = vmatprep.subr.mxu0 0.0
    %235 = vmatpush1.msra.mxu0 0.0
    %236 = vmatprep.subr.mxu0 0.0
    %237 = vmatpush1.msra.mxu0 0.0
    %238 = vmatprep.subr.mxu0 0.0
    %239 = vmatpush1.msra.mxu0 0.0
    %240 = vmatprep.subr.mxu0 0.0
    %241 = vmatpush1.msra.mxu0 0.0
    %242 = vmatprep.subr.mxu0 0.0
    %243 = vmatpush1.msra.mxu0 0.0
    %244 = vmatprep.subr.mxu0 0.0
    %245 = vmatpush1.msra.mxu0 0.0
    %246 = vmatprep.subr.mxu0 0.0
    %247 = vmatpush1.msra.mxu0 0.0
    %248 = vmatprep.subr.mxu0 0.0
    %249 = vmatpush1.msra.mxu0 0.0
    %250 = vmatprep.subr.mxu0 0.0
    %251 = vmatpush1.msra.mxu0 0.0
    %252 = vmatprep.subr.mxu0 0.0
    %253 = vmatpush1.msra.mxu0 0.0
    %254 = vmatprep.subr.mxu0 0.0
    %255 = vmatpush1.msra.mxu0 0.0
    %256 = vmatprep.subr.mxu0 0.0
    %257 = vmatpush1.msra.mxu0 0.0
    %258 = vmatprep.subr.mxu0 0.0
    %259 = vmatpush1.msra.mxu0 0.0
    %260 = vmatprep.subr.mxu0 0.0
    %261 = vmatpush1.msra.mxu0 0.0
    %262 = vmatprep.subr.mxu0 0.0
    %263 = vmatpush1.msra.mxu0 0.0
    %264 = vmatprep.subr.mxu0 0.0
    %265 = vmatpush1.msra.mxu0 0.0
    %266 = vmatprep.subr.mxu0 0.0
    %267 = vmatpush1.msra.mxu0 0.0
    %268 = vmatprep.subr.mxu0 0.0
    %269 = vmatpush1.msra.mxu0 0.0
    %270 = vmatprep.subr.mxu0 0.0
    %271 = vmatpush1.msra.mxu0 0.0
    %272 = vmatprep.subr.mxu0 0.0
    %273 = vmatpush1.msra.mxu0 0.0
    %274 = vmatprep.subr.mxu0 0.0
    %275 = vmatpush1.msra.mxu0 0.0
    %276 = vmatprep.subr.mxu0 0.0
    %277 = vmatpush1.msra.mxu0 0.0
    %278 = vmatprep.subr.mxu0 0.0
    %279 = vmatpush1.msra.mxu0 0.0
    %280 = vmatprep.subr.mxu0 0.0
    %281 = vmatpush1.msra.mxu0 0.0
    %282 = vmatprep.subr.mxu0 0.0
    %283 = vmatpush1.msra.mxu0 0.0
    %284 = vmatprep.mubr.f32.mxu0 0.0
    %285 = vmatmul.mubr.f32.gmra.mrb[0].mxu0 %v211
    %v286 = vpop.f32.mrb[0].mxu0
    %v287 = vadd.f32 %v202, %v286
    %v288 = vpop.f32.mrb[0].mxu0
    %289 = vmatprep.mubr.f32.mxu0 0.0
    %290 = vmatmul.mubr.f32.gmra.mrb[0].mxu0 %v214
    %v291 = vpop.f32.mrb[0].mxu0
    %v292 = vadd.f32 %v207, %v291
    %v293 = vpop.f32.mrb[0].mxu0
    %294 = vdwg.mxu0
    %v295 = vmax.f32 %v287, 0.0
    %v296 = vmax.f32 %v292, 0.0
    %v297 = vld [vmem:[%s5] sm:$0xff]
    %v298 = vld [vmem:[%s5 + $0x8] sm:$0x3]
    %v299 = vld [vmem:[%s6] sm:$0xff]
    %v300 = vld [vmem:[%s6 + $0x8] sm:$0x3]
    %302 = vset.pattern.permute.xlu0 0
    %303 = vperm.xlu0 %302, %v299
    %v304 = vpop.permute.xlu0 %303
    %307 = vset.pattern.permute.xlu0 0
    %308 = vperm.xlu0 %307, %v300
    %v309 = vpop.permute.xlu0 %308
    %v312 = vsel %vm209, %v297, 0
    %v315 = vsel %vm209, %v298, 0
    %v318 = vsel %vm216, %v296, 0
    %320 = vmatprep.subr.mxu0 0.0
    %321 = vmatpush1.msra.mxu0 %v295
    %322 = vmatprep.subr.mxu0 0.0
    %323 = vmatpush1.msra.mxu0 %v318
    %324 = vmatprep.subr.mxu0 0.0
    %325 = vmatpush1.msra.mxu0 0.0
    %326 = vmatprep.subr.mxu0 0.0
    %327 = vmatpush1.msra.mxu0 0.0
    %328 = vmatprep.subr.mxu0 0.0
    %329 = vmatpush1.msra.mxu0 0.0
    %330 = vmatprep.subr.mxu0 0.0
    %331 = vmatpush1.msra.mxu0 0.0
    %332 = vmatprep.subr.mxu0 0.0
    %333 = vmatpush1.msra.mxu0 0.0
    %334 = vmatprep.subr.mxu0 0.0
    %335 = vmatpush1.msra.mxu0 0.0
    %336 = vmatprep.subr.mxu0 0.0
    %337 = vmatpush1.msra.mxu0 0.0
    %338 = vmatprep.subr.mxu0 0.0
    %339 = vmatpush1.msra.mxu0 0.0
    %340 = vmatprep.subr.mxu0 0.0
    %341 = vmatpush1.msra.mxu0 0.0
    %342 = vmatprep.subr.mxu0 0.0
    %343 = vmatpush1.msra.mxu0 0.0
    %344 = vmatprep.subr.mxu0 0.0
    %345 = vmatpush1.msra.mxu0 0.0
    %346 = vmatprep.subr.mxu0 0.0
    %347 = vmatpush1.msra.mxu0 0.0
    %348 = vmatprep.subr.mxu0 0.0
    %349 = vmatpush1.msra.mxu0 0.0
    %350 = vmatprep.subr.mxu0 0.0
    %351 = vmatpush1.msra.mxu0 0.0
    %352 = vmatprep.subr.mxu0 0.0
    %353 = vmatpush1.msra.mxu0 0.0
    %354 = vmatprep.subr.mxu0 0.0
    %355 = vmatpush1.msra.mxu0 0.0
    %356 = vmatprep.subr.mxu0 0.0
    %357 = vmatpush1.msra.mxu0 0.0
    %358 = vmatprep.subr.mxu0 0.0
    %359 = vmatpush1.msra.mxu0 0.0
    %360 = vmatprep.subr.mxu0 0.0
    %361 = vmatpush1.msra.mxu0 0.0
    %362 = vmatprep.subr.mxu0 0.0
    %363 = vmatpush1.msra.mxu0 0.0
    %364 = vmatprep.subr.mxu0 0.0
    %365 = vmatpush1.msra.mxu0 0.0
    %366 = vmatprep.subr.mxu0 0.0
    %367 = vmatpush1.msra.mxu0 0.0
    %368 = vmatprep.subr.mxu0 0.0
    %369 = vmatpush1.msra.mxu0 0.0
    %370 = vmatprep.subr.mxu0 0.0
    %371 = vmatpush1.msra.mxu0 0.0
    %372 = vmatprep.subr.mxu0 0.0
    %373 = vmatpush1.msra.mxu0 0.0
    %374 = vmatprep.subr.mxu0 0.0
    %375 = vmatpush1.msra.mxu0 0.0
    %376 = vmatprep.subr.mxu0 0.0
    %377 = vmatpush1.msra.mxu0 0.0
    %378 = vmatprep.subr.mxu0 0.0
    %379 = vmatpush1.msra.mxu0 0.0
    %380 = vmatprep.subr.mxu0 0.0
    %381 = vmatpush1.msra.mxu0 0.0
    %382 = vmatprep.subr.mxu0 0.0
    %383 = vmatpush1.msra.mxu0 0.0
    %384 = vmatprep.mubr.f32.mxu0 0.0
    %385 = vmatmul.mubr.f32.gmra.mrb[0].mxu0 %v312
    %v386 = vpop.f32.mrb[0].mxu0
    %v387 = vadd.f32 %v304, %v386
    %v388 = vpop.f32.mrb[0].mxu0
    %389 = vmatprep.mubr.f32.mxu0 0.0
    %390 = vmatmul.mubr.f32.gmra.mrb[0].mxu0 %v315
    %v391 = vpop.f32.mrb[0].mxu0
    %v392 = vadd.f32 %v309, %v391
    %v393 = vpop.f32.mrb[0].mxu0
    %394 = vdwg.mxu0
    %v395 = vmax.f32 %v387, 0.0
    %v396 = vmax.f32 %v392, 0.0
    %v397 = vld [vmem:[%s7] sm:$0xff]
    %v398 = vld [vmem:[%s7 + $0x8] sm:$0x3]
    %400 = vset.pattern.permute.xlu0 0
    %401 = vperm.xlu0 %400, %v397
    %v402 = vpop.permute.xlu0 %401
    %405 = vset.pattern.permute.xlu0 0
    %406 = vperm.xlu0 %405, %v398
    %v407 = vpop.permute.xlu0 %406
    %v409 = vmul.f32 %v402, %v395
    %v410 = vmul.f32 %v407, %v396
    %v411 = vsel %vm216, %v410, 0.0
    %v412 = vadd.f32 %v409, %v411
    %v413 = vrot.slane %v412, 4
    %v414 = vadd.f32 %v412, %v413
    %v415 = vrot.slane %v414, 2
    %v416 = vadd.f32 %v414, %v415
    %v417 = vrot.slane %v416, 1
    %v418 = vadd.f32 %v416, %v417
    %v419 = vld [vmem:[#allocation2] sm:$0x1]
    %421 = vset.pattern.permute.xlu0 0
    %422 = vperm.xlu0 %421, %v419
    %v423 = vpop.permute.xlu0 %422
    %v425 = vlaneseq
    %v426 = vshrl.u32 %v425, 7
    %v427 = vsub.s32 0, %v426
    %v428 = vrot.slane %v423, %v427
    %v429 = vadd.f32 %v418, %v428
    %v430 = vmax.f32 %v429, 0.0
    %431 = vst [vmem:[#allocation3] sm:$0x1] %v430
    // Predicated region
    $region38: #{tpu_custom_call.1} parent=1 // pred_check
      _
    $region39: #{tpu_custom_call.1} parent=1 // pred_check_branch
      %433 = sbr.rel (0) target = $region41
    $region40: #{tpu_custom_call.1} parent=1 // pred_region
      %s435 = ssub.s32 16, 16
      %436 = vsyncadd [#allocation4], %s435
      %s438 = sshll.u32 [#allocation3], 4
      %s439 = int_to_ptr.vmem [resolvable:$true] %s438
      %441 = dma.vmem_to_hbm [thread:$0]  %s439, 16, %s9, [#allocation4]
    $region41: #{tpu_custom_call.1} parent=1 // pred_fallthru
      _
    // Predicated region
    $region42: #{tpu_custom_call.1} parent=1 // pred_check
      _
    $region43: #{tpu_custom_call.1} parent=1 // pred_check_branch
      %443 = sbr.rel (0) target = $region45
    $region44: #{tpu_custom_call.1} parent=1 // pred_region
      %444 = dma.done [#allocation4], 16
    $region45: #{tpu_custom_call.1} parent=1 // pred_fallthru
      _
    %445 = vsyncpa [#allocation4], 1

</llo_original>
